<compile_context>
chip_gen: v7x
topology: tpu7x:2x2x1
jax: 0.10.0
libtpu: 0.0.40
codegen_flags: <defaults>
</compile_context>

<pallas_src>
import functools

import jax
import jax.numpy as jnp
from jax.experimental import pallas as pl
from jax.experimental.pallas import tpu as pltpu

_LANE = 128
_SUBLANE = 8


# ---------------------------------------------------------------------------
# Kernels
# ---------------------------------------------------------------------------

def _se_single_pass_kernel(x_ref, w1_ref, b1_ref, w2_ref, b2_ref, o_ref, *, inv_l):
    # x_ref / o_ref: (TB, C, Lp) tile; weights fully resident in VMEM.
    # Squeeze: sum over the lane (L) axis, accumulating in f32, fold 1/L once.
    y = jnp.sum(x_ref[...], axis=2, dtype=jnp.float32) * inv_l          # (TB, C)
    # Excitation MLP: Linear -> ReLU -> Linear -> Sigmoid (tiny, off the
    # HBM-bound critical path).
    h = jnp.dot(y, w1_ref[...], preferred_element_type=jnp.float32) + b1_ref[...]
    h = jnp.maximum(h, 0.0)                                             # (TB, H)
    s = jnp.dot(h, w2_ref[...], preferred_element_type=jnp.float32) + b2_ref[...]
    s = jax.nn.sigmoid(s)                                               # (TB, C)
    # Scale: re-read x from VMEM (avoids a large live value spanning the MLP).
    o_ref[...] = x_ref[...] * s.astype(o_ref.dtype)[:, :, None]


def _se_gate_kernel(x_ref, w1_ref, b1_ref, w2_ref, b2_ref, s_ref, *, inv_l):
    # Two-phase path, phase 1: reduce over L tiles into the resident (TB, C)
    # f32 gate block, run the MLP once on the last L step (P3 accumulator).
    li = pl.program_id(1)

    @pl.when(li == 0)
    def _init():
        s_ref[...] = jnp.zeros_like(s_ref)

    s_ref[...] += jnp.sum(x_ref[...], axis=2, dtype=jnp.float32)

    @pl.when(li == pl.num_programs(1) - 1)
    def _finalize():
        y = s_ref[...] * inv_l
        h = jnp.dot(y, w1_ref[...], preferred_element_type=jnp.float32) + b1_ref[...]
        h = jnp.maximum(h, 0.0)
        s = jnp.dot(h, w2_ref[...], preferred_element_type=jnp.float32) + b2_ref[...]
        s_ref[...] = jax.nn.sigmoid(s)


def _se_scale_kernel(x_ref, s_ref, o_ref):
    # Two-phase path, phase 2: stream x again and apply the per-(batch,
    # channel) gate.
    o_ref[...] = x_ref[...] * s_ref[...].astype(o_ref.dtype)[:, :, None]


# ---------------------------------------------------------------------------
# Wrappers
# ---------------------------------------------------------------------------

def _round_up(x, m):
    return ((x + m - 1) // m) * m


def _vmem_capacity_bytes():
    # Generation-aware physical VMEM (128 MiB on v5e/v6e, 64 MiB on v7x).
    try:
        return int(pltpu.get_tpu_info().vmem_capacity_bytes)
    except Exception:
        return 64 << 20   # conservative (v7x-sized) fallback


def _se_single_pass(xp, w1, b1, w2, b2, *, inv_l, usable, weight_bytes):
    B, C, Lp = xp.shape
    H = w1.shape[1]
    itemsize = xp.dtype.itemsize
    per_batch_bytes = C * Lp * itemsize

    # Batch tile TB: target ~2-8 MiB tiles, 4 live tiles (double-buffered
    # in + out) plus resident weights within the VMEM budget, and enough grid
    # steps for v7x's two TensorCores.
    tile_budget = max(usable - weight_bytes - (2 << 20), per_batch_bytes)
    max_tb = max(tile_budget // (4 * per_batch_bytes), 1)
    target_tb = max((8 << 20) // per_batch_bytes, 1)
    tb = int(min(max_tb, target_tb, B))
    while tb > 1 and pl.cdiv(B, tb) < 16 and (tb // 2) * per_batch_bytes >= (2 << 20):
        tb //= 2
    if tb >= _SUBLANE:
        tb = (tb // _SUBLANE) * _SUBLANE

    Bp = _round_up(B, tb)
    if Bp != B:
        xp = jnp.pad(xp, ((0, Bp - B), (0, 0), (0, 0)))

    tile_bytes = tb * per_batch_bytes
    vmem_limit = int(min(max(4 * tile_bytes + 2 * weight_bytes + (2 << 20), 16 << 20),
                         usable + (8 << 20)))

    cost = pl.CostEstimate(
        flops=3 * Bp * C * Lp + 4 * Bp * C * H,
        transcendentals=Bp * (C + H),
        bytes_accessed=2 * Bp * C * Lp * itemsize + weight_bytes,
    )

    out = pl.pallas_call(
        functools.partial(_se_single_pass_kernel, inv_l=inv_l),
        out_shape=jax.ShapeDtypeStruct((Bp, C, Lp), xp.dtype),
        grid=(Bp // tb,),
        in_specs=[
            pl.BlockSpec((tb, C, Lp), lambda i: (i, 0, 0)),   # x: streamed
            pl.BlockSpec((C, H), lambda i: (0, 0)),           # w1: resident
            pl.BlockSpec((1, H), lambda i: (0, 0)),           # b1: resident
            pl.BlockSpec((H, C), lambda i: (0, 0)),           # w2: resident
            pl.BlockSpec((1, C), lambda i: (0, 0)),           # b2: resident
        ],
        out_specs=pl.BlockSpec((tb, C, Lp), lambda i: (i, 0, 0)),
        compiler_params=pltpu.CompilerParams(
            dimension_semantics=("parallel",),
            vmem_limit_bytes=vmem_limit,
        ),
        cost_estimate=cost,
    )(xp, w1, b1, w2, b2)
    return out[:B] if Bp != B else out


def _se_two_phase(xp, w1, b1, w2, b2, *, inv_l, usable, weight_bytes,
                  force_small_tiles=False):
    B, C, Lp = xp.shape
    H = w1.shape[1]
    itemsize = xp.dtype.itemsize

    # Batch tile: keep the 2-D (TB, C) gate block sublane-legal
    # (TB % 8 == 0, or TB equal to the full padded batch).
    if B <= _SUBLANE:
        tb, Bp = B, B
    else:
        tb = _SUBLANE
        Bp = _round_up(B, tb)

    # L tile: multiple of 128, sized so 4 double-buffered (tb, C, TL) tiles
    # plus weights fit the budget (target ~4 MiB tiles).
    row_bytes = tb * C * itemsize
    tile_budget = max(usable - weight_bytes - (2 << 20), row_bytes * _LANE)
    max_tl = max((tile_budget // (4 * row_bytes)) // _LANE, 1) * _LANE
    target_tl = max(((4 << 20) // row_bytes) // _LANE, 1) * _LANE
    tl = int(min(max_tl, target_tl, Lp))
    if force_small_tiles:
        tl = min(_LANE, tl)   # exercise the multi-step L reduction in tests
    Lt = _round_up(Lp, tl)

    pad_b, pad_l = Bp - B, Lt - Lp
    if pad_b or pad_l:
        xp = jnp.pad(xp, ((0, pad_b), (0, 0), (0, pad_l)))

    nb, nl = Bp // tb, Lt // tl
    tile_bytes = tb * C * tl * itemsize
    vmem_limit = int(min(max(4 * tile_bytes + 2 * weight_bytes + (2 << 20), 16 << 20),
                         usable + (8 << 20)))

    # Phase 1: per-(batch, channel) gate via L-tiled reduction + MLP.
    gate_cost = pl.CostEstimate(
        flops=2 * Bp * C * Lt + 4 * Bp * C * H,
        transcendentals=Bp * (C + H),
        bytes_accessed=Bp * C * Lt * itemsize + weight_bytes + 4 * Bp * C,
    )
    gate = pl.pallas_call(
        functools.partial(_se_gate_kernel, inv_l=inv_l),
        out_shape=jax.ShapeDtypeStruct((Bp, C), jnp.float32),
        grid=(nb, nl),
        in_specs=[
            pl.BlockSpec((tb, C, tl), lambda b, l: (b, 0, l)),
            pl.BlockSpec((C, H), lambda b, l: (0, 0)),
            pl.BlockSpec((1, H), lambda b, l: (0, 0)),
            pl.BlockSpec((H, C), lambda b, l: (0, 0)),
            pl.BlockSpec((1, C), lambda b, l: (0, 0)),
        ],
        out_specs=pl.BlockSpec((tb, C), lambda b, l: (b, 0)),
        compiler_params=pltpu.CompilerParams(
            dimension_semantics=("parallel", "arbitrary"),
            vmem_limit_bytes=vmem_limit,
        ),
        cost_estimate=gate_cost,
    )(xp, w1, b1, w2, b2)

    # Phase 2: re-stream x and scale by the gate.
    scale_cost = pl.CostEstimate(
        flops=Bp * C * Lt,
        transcendentals=0,
        bytes_accessed=2 * Bp * C * Lt * itemsize + 4 * Bp * C,
    )
    out = pl.pallas_call(
        _se_scale_kernel,
        out_shape=jax.ShapeDtypeStruct((Bp, C, Lt), xp.dtype),
        grid=(nb, nl),
        in_specs=[
            pl.BlockSpec((tb, C, tl), lambda b, l: (b, 0, l)),
            pl.BlockSpec((tb, C), lambda b, l: (b, 0)),
        ],
        out_specs=pl.BlockSpec((tb, C, tl), lambda b, l: (b, 0, l)),
        compiler_params=pltpu.CompilerParams(
            dimension_semantics=("parallel", "parallel"),
            vmem_limit_bytes=vmem_limit,
        ),
        cost_estimate=scale_cost,
    )(xp, gate)
    return out[:B, :, :Lp]


def se_block_1d(x, w1, b1, w2, b2, *, force_two_phase=False):
    """SEBlock1D forward.  x: (B, C, L); w1: (C, H); b1: (H,); w2: (H, C); b2: (C,)."""
    B, C, L = x.shape
    H = w1.shape[1]
    w1 = w1.astype(jnp.float32)
    w2 = w2.astype(jnp.float32)
    b1 = b1.reshape(1, H).astype(jnp.float32)
    b2 = b2.reshape(1, C).astype(jnp.float32)
    inv_l = 1.0 / L
    itemsize = x.dtype.itemsize

    # Lane-dense L: pad L to a multiple of 128 (zeros don't change the sum;
    # the mean divides by the original L; padded tail is sliced off below).
    Lp = _round_up(L, _LANE)
    xp = x if Lp == L else jnp.pad(x, ((0, 0), (0, 0), (0, Lp - L)))
    # TODO(synk): for very small L the 128-padding inflates HBM traffic; a
    # flattened (B, C*L) lane layout with an in-kernel reshape would avoid it.

    cap = _vmem_capacity_bytes()
    usable = cap - (12 << 20)                       # compiler-scratch headroom
    weight_bytes = 4 * (w1.size + b1.size + w2.size + b2.size)
    per_batch_bytes = C * Lp * itemsize
    single_pass_fits = 4 * per_batch_bytes + weight_bytes + (2 << 20) <= usable

    if single_pass_fits and not force_two_phase:
        out = _se_single_pass(xp, w1, b1, w2, b2, inv_l=inv_l,
                              usable=usable, weight_bytes=weight_bytes)
    else:
        out = _se_two_phase(xp, w1, b1, w2, b2, inv_l=inv_l,
                            usable=usable, weight_bytes=weight_bytes,
                            force_small_tiles=force_two_phase)

    return out[:, :, :L] if Lp != L else out


# ---------------------------------------------------------------------------
# Reference + test harness
# ---------------------------------------------------------------------------

def se_block_1d_ref(x, w1, b1, w2, b2):
    """Pure-JAX reference mirroring the PyTorch module."""
    y = x.mean(axis=2)                               # (B, C)
    h = jnp.maximum(y @ w1 + b1, 0.0)                # (B, H)
    s = jax.nn.sigmoid(h @ w2 + b2)                  # (B, C)
    return x * s[:, :, None]


def _make_params(key, C, H):
    k1, k2, k3, k4 = jax.random.split(key, 4)
    # PyTorch nn.Linear init: U(-1/sqrt(fan_in), 1/sqrt(fan_in)); weights
    # stored already transposed to (in, out) for y @ W.
    bound1 = 1.0 / jnp.sqrt(C)
    w1 = jax.random.uniform(k1, (C, H), jnp.float32, -bound1, bound1)
    b1 = jax.random.uniform(k2, (H,), jnp.float32, -bound1, bound1)
    bound2 = 1.0 / jnp.sqrt(H)
    w2 = jax.random.uniform(k3, (H, C), jnp.float32, -bound2, bound2)
    b2 = jax.random.uniform(k4, (C,), jnp.float32, -bound2, bound2)
    return w1, b1, w2, b2


if __name__ == "__main__":
    key = jax.random.PRNGKey(0)

    # 1) Module-sized shape (channel=32, reduction=8); exercises the lane-dense
    #    L-padding path (L=16 is not a multiple of 128).
    B, C, L = 2, 32, 16
    H = C // 8
    kx, kp = jax.random.split(key)
    x = jax.random.normal(kx, (B, C, L), dtype=jnp.float32)
    w1, b1, w2, b2 = _make_params(kp, C, H)
    out = jax.block_until_ready(se_block_1d(x, w1, b1, w2, b2))
    ref = se_block_1d_ref(x, w1, b1, w2, b2)
    assert out.shape == (B, C, L)
    assert jnp.allclose(out, ref, atol=1e-5, rtol=1e-5)

    # 2) Lane-dense L with batch blocking (single-pass streamed path).
    B2, C2, L2 = 16, 64, 256
    H2 = C2 // 8
    kx2, kp2 = jax.random.split(jax.random.PRNGKey(1))
    x2 = jax.random.normal(kx2, (B2, C2, L2), dtype=jnp.float32)
    p2 = _make_params(kp2, C2, H2)
    out2 = jax.block_until_ready(se_block_1d(x2, *p2))
    assert jnp.allclose(out2, se_block_1d_ref(x2, *p2), atol=1e-5, rtol=1e-5)

    # 3) Two-phase (L-tiled reduce + scale) fallback, forced at a small shape
    #    so it runs fast; used automatically when a (1, C, L) tile can't fit.
    B3, C3, L3 = 4, 16, 384
    H3 = C3 // 8
    kx3, kp3 = jax.random.split(jax.random.PRNGKey(2))
    x3 = jax.random.normal(kx3, (B3, C3, L3), dtype=jnp.float32)
    p3 = _make_params(kp3, C3, H3)
    out3 = jax.block_until_ready(se_block_1d(x3, *p3, force_two_phase=True))
    assert jnp.allclose(out3, se_block_1d_ref(x3, *p3), atol=1e-5, rtol=1e-5)

    print("KERNEL_OK")
</pallas_src>

<mosaic_0001>
module attributes {stable_mosaic.version = 11 : i64} {
  func.func @_se_single_pass_kernel(%arg0: i32, %arg1: memref<2x32x128xf32, #tpu.memory_space<vmem>>, %arg2: memref<32x4xf32, #tpu.memory_space<vmem>>, %arg3: memref<1x4xf32, #tpu.memory_space<vmem>>, %arg4: memref<4x32xf32, #tpu.memory_space<vmem>>, %arg5: memref<1x32xf32, #tpu.memory_space<vmem>>, %arg6: memref<2x32x128xf32, #tpu.memory_space<vmem>>) attributes {dimension_semantics = [#tpu.dimension_semantics<parallel>], iteration_bounds = array<i64: 1>, scalar_prefetch = 0 : i64, scratch_operands = 0 : i64, tpu.core_type = #tpu.core_type<tc>, window_params = [{transform_indices = @transform_0, window_bounds = array<i64: 2, 32, 128>}, {pipeline_mode = #tpu.pipeline_mode<synchronous>, transform_indices = @transform_1, window_bounds = array<i64: 32, 4>}, {pipeline_mode = #tpu.pipeline_mode<synchronous>, transform_indices = @transform_2, window_bounds = array<i64: 1, 4>}, {pipeline_mode = #tpu.pipeline_mode<synchronous>, transform_indices = @transform_3, window_bounds = array<i64: 4, 32>}, {pipeline_mode = #tpu.pipeline_mode<synchronous>, transform_indices = @transform_4, window_bounds = array<i64: 1, 32>}, {transform_indices = @transform_5, window_bounds = array<i64: 2, 32, 128>}]} {
    %c0 = arith.constant 0 : index
    %c0_0 = arith.constant 0 : index
    %c0_1 = arith.constant 0 : index
    %0 = vector.load %arg1[%c0, %c0_0, %c0_1] : memref<2x32x128xf32, #tpu.memory_space<vmem>>, vector<2x32x128xf32>
    %cst = arith.constant dense<0.000000e+00> : vector<2x32xf32>
    %1 = vector.multi_reduction <add>, %0, %cst [2] : vector<2x32x128xf32> to vector<2x32xf32>
    %cst_2 = arith.constant 6.250000e-02 : f32
    %2 = vector.broadcast %cst_2 : f32 to vector<2x32xf32>
    %3 = arith.mulf %1, %2 : vector<2x32xf32>
    %c0_3 = arith.constant 0 : index
    %c0_4 = arith.constant 0 : index
    %4 = vector.load %arg2[%c0_3, %c0_4] : memref<32x4xf32, #tpu.memory_space<vmem>>, vector<32x4xf32>
    %cst_5 = arith.constant dense<0.000000e+00> : vector<2x4xf32>
    %5 = tpu.matmul %3, %4, %cst_5 {dimension_numbers = #tpu.dot_dimension_numbers<[1], [0], [0], [1], [0, 0, 1, 1], [], []>} : vector<2x32xf32>, vector<32x4xf32>, vector<2x4xf32> -> vector<2x4xf32>
    %c0_6 = arith.constant 0 : index
    %c0_7 = arith.constant 0 : index
    %6 = vector.load %arg3[%c0_6, %c0_7] : memref<1x4xf32, #tpu.memory_space<vmem>>, vector<1x4xf32>
    %7 = vector.broadcast %6 : vector<1x4xf32> to vector<2x4xf32>
    %8 = arith.addf %5, %7 : vector<2x4xf32>
    %cst_8 = arith.constant 0.000000e+00 : f32
    %9 = vector.broadcast %cst_8 : f32 to vector<2x4xf32>
    %10 = arith.maximumf %8, %9 : vector<2x4xf32>
    %c0_9 = arith.constant 0 : index
    %c0_10 = arith.constant 0 : index
    %11 = vector.load %arg4[%c0_9, %c0_10] : memref<4x32xf32, #tpu.memory_space<vmem>>, vector<4x32xf32>
    %cst_11 = arith.constant dense<0.000000e+00> : vector<2x32xf32>
    %12 = tpu.matmul %10, %11, %cst_11 {dimension_numbers = #tpu.dot_dimension_numbers<[1], [0], [0], [1], [0, 0, 1, 1], [], []>} : vector<2x4xf32>, vector<4x32xf32>, vector<2x32xf32> -> vector<2x32xf32>
    %c0_12 = arith.constant 0 : index
    %c0_13 = arith.constant 0 : index
    %13 = vector.load %arg5[%c0_12, %c0_13] : memref<1x32xf32, #tpu.memory_space<vmem>>, vector<1x32xf32>
    %14 = vector.broadcast %13 : vector<1x32xf32> to vector<2x32xf32>
    %15 = arith.addf %12, %14 : vector<2x32xf32>
    %16 = arith.negf %15 : vector<2x32xf32>
    %17 = math.exp %16 : vector<2x32xf32>
    %cst_14 = arith.constant 1.000000e+00 : f32
    %18 = vector.broadcast %cst_14 : f32 to vector<2x32xf32>
    %19 = arith.addf %18, %17 : vector<2x32xf32>
    %20 = arith.divf %18, %19 : vector<2x32xf32>
    %c0_15 = arith.constant 0 : index
    %c0_16 = arith.constant 0 : index
    %c0_17 = arith.constant 0 : index
    %21 = vector.load %arg1[%c0_15, %c0_16, %c0_17] : memref<2x32x128xf32, #tpu.memory_space<vmem>>, vector<2x32x128xf32>
    %22 = vector.shape_cast %20 : vector<2x32xf32> to vector<2x32x1xf32>
    %23 = vector.broadcast %22 : vector<2x32x1xf32> to vector<2x32x128xf32>
    %24 = arith.mulf %21, %23 : vector<2x32x128xf32>
    %c0_18 = arith.constant 0 : index
    %c0_19 = arith.constant 0 : index
    %c0_20 = arith.constant 0 : index
    %25 = vector.load %arg6[%c0_18, %c0_19, %c0_20] : memref<2x32x128xf32, #tpu.memory_space<vmem>>, vector<2x32x128xf32>
    tpu.vector_store %arg6[%c0_18, %c0_19, %c0_20], %24 {strides = array<i32>} : memref<2x32x128xf32, #tpu.memory_space<vmem>>, vector<2x32x128xf32>,
    return
  }
  func.func @transform_0(%arg0: i32) -> (i32, i32, i32) {
    %c0_i32 = arith.constant 0 : i32
    %c0_i32_0 = arith.constant 0 : i32
    %c0_i32_1 = arith.constant 0 : i32
    return %arg0, %c0_i32, %c0_i32_0 : i32, i32, i32
  }
  func.func @transform_1(%arg0: i32) -> (i32, i32) {
    %c0_i32 = arith.constant 0 : i32
    %c0_i32_0 = arith.constant 0 : i32
    %c0_i32_1 = arith.constant 0 : i32
    return %c0_i32, %c0_i32_0 : i32, i32
  }
  func.func @transform_2(%arg0: i32) -> (i32, i32) {
    %c0_i32 = arith.constant 0 : i32
    %c0_i32_0 = arith.constant 0 : i32
    %c0_i32_1 = arith.constant 0 : i32
    return %c0_i32, %c0_i32_0 : i32, i32
  }
  func.func @transform_3(%arg0: i32) -> (i32, i32) {
    %c0_i32 = arith.constant 0 : i32
    %c0_i32_0 = arith.constant 0 : i32
    %c0_i32_1 = arith.constant 0 : i32
    return %c0_i32, %c0_i32_0 : i32, i32
  }
  func.func @transform_4(%arg0: i32) -> (i32, i32) {
    %c0_i32 = arith.constant 0 : i32
    %c0_i32_0 = arith.constant 0 : i32
    %c0_i32_1 = arith.constant 0 : i32
    return %c0_i32, %c0_i32_0 : i32, i32
  }
  func.func @transform_5(%arg0: i32) -> (i32, i32, i32) {
    %c0_i32 = arith.constant 0 : i32
    %c0_i32_0 = arith.constant 0 : i32
    %c0_i32_1 = arith.constant 0 : i32
    return %arg0, %c0_i32, %c0_i32_0 : i32, i32, i32
  }
}

</mosaic_0001>

<llo_original>
// kernel: tpu_custom_call.1
$region0: #{tpu_custom_call.1}
  #allocation0 [shape = 'u32[]', space=smem, size = 0x4, offset = 0x4, fixed_abs, tag = 'smem constant byte address 0x4 - core index']
  #allocation1 [shape = 'u32[144,128]{1,0:T(1,128)}', space=vmem, size = 0x12000, scoped, tag = 'internal scratch']
  %s0 = inlined_call_operand.hbm [shape: f32[2,32,128], index: 0, kind: input, shape index: {}]
  %s1 = inlined_call_operand.vmem [shape: f32[32,4], index: 1, kind: input, shape index: {}]
  %s2 = inlined_call_operand.vmem [shape: f32[1,4], index: 2, kind: input, shape index: {}]
  %s3 = inlined_call_operand.vmem [shape: f32[4,32], index: 3, kind: input, shape index: {}]
  %s4 = inlined_call_operand.vmem [shape: f32[1,32], index: 4, kind: input, shape index: {}]
  %s5 = inlined_call_operand.hbm [shape: f32[2,32,128], index: 5, kind: output, shape index: {}]
  %s6 = sld [smem:[#allocation0]]
  $region34: #{tpu_custom_call.1} parent=0
    _
  %s8 = ssub.s32 1, %s6
  %s9 = scalar_select 0, %s8, %s6
  $region1: #{tpu_custom_call.1} parent=0
    #allocation2 [shape = 'u8[32768]{0}', space=vmem, size = 0x8000, scoped, tag = 'input window, operand 0, single buffered']
    #allocation3 [shape = 's32[1]{0}', space=sflag, size = 0x4, scoped, tag = 'scoped memory for tpu_custom_call.1']
    #allocation4 [shape = 's32[1]{0}', space=sflag, size = 0x4, scoped, tag = 'scoped memory for tpu_custom_call.1']
    #allocation5 [shape = 'u8[32768]{0}', space=vmem, size = 0x8000, scoped, tag = 'output window, operand 0, single buffered']
    %10 = vsyncpa [#allocation3], 0
    %11 = vsyncpa [#allocation4], 0
    // Predicated region
    $region2: #{tpu_custom_call.1} parent=1 // pred_check
      _
    $region3: #{tpu_custom_call.1} parent=1 // pred_check_branch
      %13 = sbr.rel (0) target = $region5
    $region4: #{tpu_custom_call.1} parent=1 // pred_region
      %s15 = ssub.s32 1024, 1024
      %16 = vsyncadd [#allocation3], %s15
      %s17 = sshll.u32 [#allocation2], 4
      %s18 = int_to_ptr.vmem [resolvable:$true] %s17
      %23 = dma.hbm_to_vmem [thread:$0]  %s0, 1024, %s18, [#allocation3], 128, 128, 8
    $region5: #{tpu_custom_call.1} parent=1 // pred_fallthru
      _
    // Predicated region
    $region6: #{tpu_custom_call.1} parent=1 // pred_check
      _
    $region7: #{tpu_custom_call.1} parent=1 // pred_check_branch
      %25 = sbr.rel (0) target = $region9
    $region8: #{tpu_custom_call.1} parent=1 // pred_region
      _
    $region9: #{tpu_custom_call.1} parent=1 // pred_fallthru
      _
    // Predicated region
    $region10: #{tpu_custom_call.1} parent=1 // pred_check
      _
    $region11: #{tpu_custom_call.1} parent=1 // pred_check_branch
      %27 = sbr.rel (0) target = $region13
    $region12: #{tpu_custom_call.1} parent=1 // pred_region
      _
    $region13: #{tpu_custom_call.1} parent=1 // pred_fallthru
      _
    // Predicated region
    $region14: #{tpu_custom_call.1} parent=1 // pred_check
      _
    $region15: #{tpu_custom_call.1} parent=1 // pred_check_branch
      %29 = sbr.rel (0) target = $region17
    $region16: #{tpu_custom_call.1} parent=1 // pred_region
      _
    $region17: #{tpu_custom_call.1} parent=1 // pred_fallthru
      _
    // Predicated region
    $region18: #{tpu_custom_call.1} parent=1 // pred_check
      _
    $region19: #{tpu_custom_call.1} parent=1 // pred_check_branch
      %31 = sbr.rel (0) target = $region21
    $region20: #{tpu_custom_call.1} parent=1 // pred_region
      _
    $region21: #{tpu_custom_call.1} parent=1 // pred_fallthru
      _
    // Predicated region
    $region22: #{tpu_custom_call.1} parent=1 // pred_check
      _
    $region23: #{tpu_custom_call.1} parent=1 // pred_check_branch
      %33 = sbr.rel (0) target = $region25
    $region24: #{tpu_custom_call.1} parent=1 // pred_region
      %34 = dma.done [#allocation3], 1024
    $region25: #{tpu_custom_call.1} parent=1 // pred_fallthru
      _
    %v35 = vld [vmem:[#allocation2] sm:$0xff]
    %v36 = vld [vmem:[#allocation2 + $0x8] sm:$0xff]
    %v37 = vld [vmem:[#allocation2 + $0x10] sm:$0xff]
    %v38 = vld [vmem:[#allocation2 + $0x18] sm:$0xff]
    %v39 = vld [vmem:[#allocation2 + $0x20] sm:$0xff]
    %v40 = vld [vmem:[#allocation2 + $0x28] sm:$0xff]
    %v41 = vld [vmem:[#allocation2 + $0x30] sm:$0xff]
    %v42 = vld [vmem:[#allocation2 + $0x38] sm:$0xff]
    %43 = vadd.xlane.f32.xlu0 %v35
    %v44 = vpop.xlane.xlu0 %43
    %45 = vadd.xlane.f32.xlu0 %v36
    %v46 = vpop.xlane.xlu0 %45
    %47 = vadd.xlane.f32.xlu0 %v37
    %v48 = vpop.xlane.xlu0 %47
    %49 = vadd.xlane.f32.xlu0 %v38
    %v50 = vpop.xlane.xlu0 %49
    %51 = vadd.xlane.f32.xlu0 %v39
    %v52 = vpop.xlane.xlu0 %51
    %53 = vadd.xlane.f32.xlu0 %v40
    %v54 = vpop.xlane.xlu0 %53
    %55 = vadd.xlane.f32.xlu0 %v41
    %v56 = vpop.xlane.xlu0 %55
    %57 = vadd.xlane.f32.xlu0 %v42
    %v58 = vpop.xlane.xlu0 %57
    %v59 = vmul.f32 %v44, 0.0625
    %v60 = vmul.f32 %v46, 0.0625
    %v61 = vmul.f32 %v48, 0.0625
    %v62 = vmul.f32 %v50, 0.0625
    %v63 = vmul.f32 %v52, 0.0625
    %v64 = vmul.f32 %v54, 0.0625
    %v65 = vmul.f32 %v56, 0.0625
    %v66 = vmul.f32 %v58, 0.0625
    %v67 = vld [vmem:[%s1] sm:$0xff]
    %v68 = vld [vmem:[%s1 + $0x8] sm:$0xff]
    %v69 = vld [vmem:[%s1 + $0x10] sm:$0xff]
    %v70 = vld [vmem:[%s1 + $0x18] sm:$0xff]
    %v71 = vld [vmem:[%s2] sm:$0x1]
    %v73 = vlaneseq
    %v74 = vshrl.u32 %v73, 7
    %v75 = vsub.s32 0, %v74
    %v76 = vrot.slane %v71, %v75
    %v86 = vlaneseq
    %v87 = vand.u32 %v86, 127
    %v88 = vlaneseq
    %v89 = vshrl.u32 %v88, 7
    %v90 = vsub.s32 %v87, %v89
    %v91 = vrot.slane %v59, %v90
    %v92 = vadd.s32 %v87, 4294967288
    %v93 = vlaneseq
    %v94 = vshrl.u32 %v93, 7
    %v95 = vsub.s32 %v92, %v94
    %v96 = vrot.slane %v60, %v95
    %vm97 = vcmask 130112
    %v98 = vsel %vm97, %v96, %v91
    %v99 = vadd.s32 %v87, 4294967280
    %v100 = vlaneseq
    %v101 = vshrl.u32 %v100, 7
    %v102 = vsub.s32 %v99, %v101
    %v103 = vrot.slane %v61, %v102
    %vm104 = vcmask 195712
    %v105 = vsel %vm104, %v103, %v98
    %v106 = vadd.s32 %v87, 4294967272
    %v107 = vlaneseq
    %v108 = vshrl.u32 %v107, 7
    %v109 = vsub.s32 %v106, %v108
    %v110 = vrot.slane %v62, %v109
    %vm111 = vcmask 261312
    %v112 = vsel %vm111, %v110, %v105
    %v113 = vlaneseq
    %v114 = vshrl.u32 %v113, 7
    %v115 = vsub.s32 %v87, %v114
    %v116 = vrot.slane %v63, %v115
    %v117 = vlaneseq
    %v118 = vshrl.u32 %v117, 7
    %v119 = vsub.s32 %v92, %v118
    %v120 = vrot.slane %v64, %v119
    %v121 = vsel %vm97, %v120, %v116
    %v122 = vlaneseq
    %v123 = vshrl.u32 %v122, 7
    %v124 = vsub.s32 %v99, %v123
    %v125 = vrot.slane %v65, %v124
    %v126 = vsel %vm104, %v125, %v121
    %v127 = vlaneseq
    %v128 = vshrl.u32 %v127, 7
    %v129 = vsub.s32 %v106, %v128
    %v130 = vrot.slane %v66, %v129
    %v131 = vsel %vm111, %v130, %v126
    %vm132 = vcmask 1041409
    %v133 = vsel %vm132, %v131, %v112
    %vm134 = vcmask 261120
    %v135 = vsel %vm134, %v133, 0
    %137 = vmatprep.subr.mxu0 0.0
    %138 = vmatpush1.msra.mxu0 %v67
    %139 = vmatprep.subr.mxu0 0.0
    %140 = vmatpush1.msra.mxu0 %v68
    %141 = vmatprep.subr.mxu0 0.0
    %142 = vmatpush1.msra.mxu0 %v69
    %143 = vmatprep.subr.mxu0 0.0
    %144 = vmatpush1.msra.mxu0 %v70
    %145 = vmatprep.subr.mxu0 0.0
    %146 = vmatpush1.msra.mxu0 0.0
    %147 = vmatprep.subr.mxu0 0.0
    %148 = vmatpush1.msra.mxu0 0.0
    %149 = vmatprep.subr.mxu0 0.0
    %150 = vmatpush1.msra.mxu0 0.0
    %151 = vmatprep.subr.mxu0 0.0
    %152 = vmatpush1.msra.mxu0 0.0
    %153 = vmatprep.subr.mxu0 0.0
    %154 = vmatpush1.msra.mxu0 0.0
    %155 = vmatprep.subr.mxu0 0.0
    %156 = vmatpush1.msra.mxu0 0.0
    %157 = vmatprep.subr.mxu0 0.0
    %158 = vmatpush1.msra.mxu0 0.0
    %159 = vmatprep.subr.mxu0 0.0
    %160 = vmatpush1.msra.mxu0 0.0
    %161 = vmatprep.subr.mxu0 0.0
    %162 = vmatpush1.msra.mxu0 0.0
    %163 = vmatprep.subr.mxu0 0.0
    %164 = vmatpush1.msra.mxu0 0.0
    %165 = vmatprep.subr.mxu0 0.0
    %166 = vmatpush1.msra.mxu0 0.0
    %167 = vmatprep.subr.mxu0 0.0
    %168 = vmatpush1.msra.mxu0 0.0
    %169 = vmatprep.subr.mxu0 0.0
    %170 = vmatpush1.msra.mxu0 0.0
    %171 = vmatprep.subr.mxu0 0.0
    %172 = vmatpush1.msra.mxu0 0.0
    %173 = vmatprep.subr.mxu0 0.0
    %174 = vmatpush1.msra.mxu0 0.0
    %175 = vmatprep.subr.mxu0 0.0
    %176 = vmatpush1.msra.mxu0 0.0
    %177 = vmatprep.subr.mxu0 0.0
    %178 = vmatpush1.msra.mxu0 0.0
    %179 = vmatprep.subr.mxu0 0.0
    %180 = vmatpush1.msra.mxu0 0.0
    %181 = vmatprep.subr.mxu0 0.0
    %182 = vmatpush1.msra.mxu0 0.0
    %183 = vmatprep.subr.mxu0 0.0
    %184 = vmatpush1.msra.mxu0 0.0
    %185 = vmatprep.subr.mxu0 0.0
    %186 = vmatpush1.msra.mxu0 0.0
    %187 = vmatprep.subr.mxu0 0.0
    %188 = vmatpush1.msra.mxu0 0.0
    %189 = vmatprep.subr.mxu0 0.0
    %190 = vmatpush1.msra.mxu0 0.0
    %191 = vmatprep.subr.mxu0 0.0
    %192 = vmatpush1.msra.mxu0 0.0
    %193 = vmatprep.subr.mxu0 0.0
    %194 = vmatpush1.msra.mxu0 0.0
    %195 = vmatprep.subr.mxu0 0.0
    %196 = vmatpush1.msra.mxu0 0.0
    %197 = vmatprep.subr.mxu0 0.0
    %198 = vmatpush1.msra.mxu0 0.0
    %199 = vmatprep.subr.mxu0 0.0
    %200 = vmatpush1.msra.mxu0 0.0
    %201 = vmatprep.mubr.f32.mxu0 0.0
    %202 = vmatmul.mubr.f32.gmra.mrb[0].mxu0 %v135
    %v203 = vpop.f32.mrb[0].mxu0
    %v204 = vadd.f32 %v76, %v203
    %v205 = vpop.f32.mrb[0].mxu0
    %206 = vdwg.mxu0
    %v207 = vmax.f32 %v204, 0.0
    %v208 = vld [vmem:[%s3] sm:$0xf]
    %v209 = vld [vmem:[%s4] sm:$0x1]
    %v211 = vlaneseq
    %v212 = vshrl.u32 %v211, 7
    %v213 = vsub.s32 0, %v212
    %v214 = vrot.slane %v209, %v213
    %vm216 = vcmask 31744
    %v218 = vsel %vm216, %v207, 0
    %vm220 = vcmask 1043456
    %v222 = vsel %vm220, %v208, 0
    %224 = vmatprep.subr.mxu0 0.0
    %225 = vmatpush1.msra.mxu0 %v222
    %226 = vmatprep.subr.mxu0 0.0
    %227 = vmatpush1.msra.mxu0 0.0
    %228 = vmatprep.subr.mxu0 0.0
    %229 = vmatpush1.msra.mxu0 0.0
    %230 = vmatprep.subr.mxu0 0.0
    %231 = vmatpush1.msra.mxu0 0.0
    %232 = vmatprep.subr.mxu0 0.0
    %233 = vmatpush1.msra.mxu0 0.0
    %234 = vmatprep.subr.mxu0 0.0
    %235 = vmatpush1.msra.mxu0 0.0
    %236 = vmatprep.subr.mxu0 0.0
    %237 = vmatpush1.msra.mxu0 0.0
    %238 = vmatprep.subr.mxu0 0.0
    %239 = vmatpush1.msra.mxu0 0.0
    %240 = vmatprep.subr.mxu0 0.0
    %241 = vmatpush1.msra.mxu0 0.0
    %242 = vmatprep.subr.mxu0 0.0
    %243 = vmatpush1.msra.mxu0 0.0
    %244 = vmatprep.subr.mxu0 0.0
    %245 = vmatpush1.msra.mxu0 0.0
    %246 = vmatprep.subr.mxu0 0.0
    %247 = vmatpush1.msra.mxu0 0.0
    %248 = vmatprep.subr.mxu0 0.0
    %249 = vmatpush1.msra.mxu0 0.0
    %250 = vmatprep.subr.mxu0 0.0
    %251 = vmatpush1.msra.mxu0 0.0
    %252 = vmatprep.subr.mxu0 0.0
    %253 = vmatpush1.msra.mxu0 0.0
    %254 = vmatprep.subr.mxu0 0.0
    %255 = vmatpush1.msra.mxu0 0.0
    %256 = vmatprep.subr.mxu0 0.0
    %257 = vmatpush1.msra.mxu0 0.0
    %258 = vmatprep.subr.mxu0 0.0
    %259 = vmatpush1.msra.mxu0 0.0
    %260 = vmatprep.subr.mxu0 0.0
    %261 = vmatpush1.msra.mxu0 0.0
    %262 = vmatprep.subr.mxu0 0.0
    %263 = vmatpush1.msra.mxu0 0.0
    %264 = vmatprep.subr.mxu0 0.0
    %265 = vmatpush1.msra.mxu0 0.0
    %266 = vmatprep.subr.mxu0 0.0
    %267 = vmatpush1.msra.mxu0 0.0
    %268 = vmatprep.subr.mxu0 0.0
    %269 = vmatpush1.msra.mxu0 0.0
    %270 = vmatprep.subr.mxu0 0.0
    %271 = vmatpush1.msra.mxu0 0.0
    %272 = vmatprep.subr.mxu0 0.0
    %273 = vmatpush1.msra.mxu0 0.0
    %274 = vmatprep.subr.mxu0 0.0
    %275 = vmatpush1.msra.mxu0 0.0
    %276 = vmatprep.subr.mxu0 0.0
    %277 = vmatpush1.msra.mxu0 0.0
    %278 = vmatprep.subr.mxu0 0.0
    %279 = vmatpush1.msra.mxu0 0.0
    %280 = vmatprep.subr.mxu0 0.0
    %281 = vmatpush1.msra.mxu0 0.0
    %282 = vmatprep.subr.mxu0 0.0
    %283 = vmatpush1.msra.mxu0 0.0
    %284 = vmatprep.subr.mxu0 0.0
    %285 = vmatpush1.msra.mxu0 0.0
    %286 = vmatprep.subr.mxu0 0.0
    %287 = vmatpush1.msra.mxu0 0.0
    %288 = vmatprep.mubr.f32.mxu0 0.0
    %289 = vmatmul.mubr.f32.gmra.mrb[0].mxu0 %v218
    %v290 = vpop.f32.mrb[0].mxu0
    %v291 = vadd.f32 %v214, %v290
    %v292 = vpop.f32.mrb[0].mxu0
    %293 = vdwg.mxu0
    %v294 = vxor.u32 %v291, 2147483648
    %v295 = vmul.f32 %v294, 1.442695
    %v296 = vpow.pop %v295
    %v297 = vadd.f32 %v296, 1.0
    %v298 = vrcp.pop %v297
    %v299 = vmul.f32 1.0, %v298
    %v300 = vlaneseq
    %v301 = vshrl.u32 %v300, 7
    %v302 = vsub.s32 0, %v301
    %v303 = vrot.slane %v299, %v302
    %305 = vbcast.lane.b32.xlu0 %v303, 256
    %v306 = vpop.permute.xlu0 %305
    %s308 = sor.u32 256, 8
    %309 = vbcast.lane.b32.xlu0 %v303, %s308
    %v310 = vpop.permute.xlu0 %309
    %s312 = sor.u32 256, 16
    %313 = vbcast.lane.b32.xlu0 %v303, %s312
    %v314 = vpop.permute.xlu0 %313
    %s316 = sor.u32 256, 24
    %317 = vbcast.lane.b32.xlu0 %v303, %s316
    %v318 = vpop.permute.xlu0 %317
    %v319 = vlaneseq
    %v320 = vshrl.u32 %v319, 7
    %v321 = vsub.s32 1, %v320
    %v322 = vrot.slane %v299, %v321
    %324 = vbcast.lane.b32.xlu0 %v322, 256
    %v325 = vpop.permute.xlu0 %324
    %s327 = sor.u32 256, 8
    %328 = vbcast.lane.b32.xlu0 %v322, %s327
    %v329 = vpop.permute.xlu0 %328
    %s331 = sor.u32 256, 16
    %332 = vbcast.lane.b32.xlu0 %v322, %s331
    %v333 = vpop.permute.xlu0 %332
    %s335 = sor.u32 256, 24
    %336 = vbcast.lane.b32.xlu0 %v322, %s335
    %v337 = vpop.permute.xlu0 %336
    %v338 = vmul.f32 %v35, %v306
    %v339 = vmul.f32 %v36, %v310
    %v340 = vmul.f32 %v37, %v314
    %v341 = vmul.f32 %v38, %v318
    %v342 = vmul.f32 %v39, %v325
    %v343 = vmul.f32 %v40, %v329
    %v344 = vmul.f32 %v41, %v333
    %v345 = vmul.f32 %v42, %v337
    %346 = vst [vmem:[#allocation5] sm:$0xff] %v338
    %347 = vst [vmem:[#allocation5 + $0x8] sm:$0xff] %v339
    %348 = vst [vmem:[#allocation5 + $0x10] sm:$0xff] %v340
    %349 = vst [vmem:[#allocation5 + $0x18] sm:$0xff] %v341
    %350 = vst [vmem:[#allocation5 + $0x20] sm:$0xff] %v342
    %351 = vst [vmem:[#allocation5 + $0x28] sm:$0xff] %v343
    %352 = vst [vmem:[#allocation5 + $0x30] sm:$0xff] %v344
    %353 = vst [vmem:[#allocation5 + $0x38] sm:$0xff] %v345
    // Predicated region
    $region26: #{tpu_custom_call.1} parent=1 // pred_check
      _
    $region27: #{tpu_custom_call.1} parent=1 // pred_check_branch
      %355 = sbr.rel (0) target = $region29
    $region28: #{tpu_custom_call.1} parent=1 // pred_region
      %s357 = ssub.s32 1024, 1024
      %358 = vsyncadd [#allocation4], %s357
      %s359 = sshll.u32 [#allocation5], 4
      %s360 = int_to_ptr.vmem [resolvable:$true] %s359
      %365 = dma.vmem_to_hbm [thread:$0]  %s360, 1024, %s5, [#allocation4], 128, 128, 8
    $region29: #{tpu_custom_call.1} parent=1 // pred_fallthru
      _
    // Predicated region
    $region30: #{tpu_custom_call.1} parent=1 // pred_check
      _
    $region31: #{tpu_custom_call.1} parent=1 // pred_check_branch
      %367 = sbr.rel (0) target = $region33
    $region32: #{tpu_custom_call.1} parent=1 // pred_region
      %368 = dma.done [#allocation4], 1024
    $region33: #{tpu_custom_call.1} parent=1 // pred_fallthru
      _
    %369 = vsyncpa [#allocation3], 1
    %370 = vsyncpa [#allocation4], 1

</llo_original>
